<compile_context>
chip_gen: v7x
topology: tpu7x:2x2x1
jax: 0.10.0
libtpu: 0.0.40
codegen_flags: <defaults>
</compile_context>

<pallas_src>
import math

import jax
import jax.numpy as jnp
from jax.experimental import pallas as pl
from jax.experimental.pallas import tpu as pltpu

_LANE = 512          # last-dim width (multiple of 128) -> unmasked full vst
_ROW_ALIGN = 8       # sublane alignment for the slab row count
_MAX_ROW_TILE = 2048  # 2048 * 512 * 4 B = 4 MiB f32 per block


def _poly_linear_kernel(params_ref, x_ref, o_ref):
    # params_ref: SMEM (5,) f32 = [w0, w1, w2, w3, b] (loaded once, constant
    #             index map -> never re-fetched per grid step).
    # x_ref / o_ref: VMEM (row_tile, _LANE) f32 tiles of the raw-x slab.
    w0 = params_ref[0]
    w1 = params_ref[1]
    w2 = params_ref[2]
    w3 = params_ref[3]
    b = params_ref[4]

    x = x_ref[...]
    # Linear(4, 1) on [x, x^2, x^3, x^4] in Horner form (pure VPU, no MXU):
    #   y = w0*x + w1*x^2 + w2*x^3 + w3*x^4 + b
    o_ref[...] = b + x * (w0 + x * (w1 + x * (w2 + x * w3)))


def _round_up(v, m):
    return ((v + m - 1) // m) * m


def polynomi_regression_forward(xs, weight, bias):
    """Fused PolynomiRegression forward.

    xs:     (N,)   f32 raw inputs (the linspace in the original script).
    weight: (1, 4) f32 -- nn.Linear(4, 1) weight.
    bias:   (1,)   f32 -- nn.Linear(4, 1) bias.
    Returns (N, 1) f32 == Linear(4, 1)([x, x^2, x^3, x^4]).
    """
    assert xs.ndim == 1
    assert xs.dtype == jnp.float32, "kernel computes and stores in float32"
    assert weight.shape == (1, 4) and bias.shape == (1,)
    n = xs.shape[0]

    params = jnp.concatenate(
        [weight.reshape(-1), bias.reshape(-1)]).astype(jnp.float32)  # (5,)

    slab_elems = _LANE * _ROW_ALIGN  # 4096
    aligned = (n % slab_elems == 0)
    if aligned:
        # Copy-free path: metadata-only reshape, no pad, no output slice.
        x_slab = xs.reshape(n // _LANE, _LANE)
    else:
        # Ragged tail: pad only to the next 8x512 stripe (<= 4095 elements).
        # TODO(synk): for very large ragged N, a masked in-kernel tail (or
        # allow_input_fusion on the pad) would remove this pad+slice copy too.
        n_pad = _round_up(n, slab_elems)
        x_slab = jnp.pad(xs, (0, n_pad - n)).reshape(n_pad // _LANE, _LANE)

    n_rows = x_slab.shape[0]  # multiple of 8

    # Row tile: as large as possible (4 MiB blocks), but keep >= 2 grid steps
    # whenever there is more than one 8-row stripe of work so v7x can shard
    # tiles across its two TensorCores.  Boundary blocks need not divide
    # n_rows -- Pallas masks out-of-bounds rows of the last block.
    row_tile = min(_MAX_ROW_TILE, n_rows)
    if n_rows > _ROW_ALIGN and pl.cdiv(n_rows, row_tile) < 2:
        row_tile = _round_up(pl.cdiv(n_rows, 2), _ROW_ALIGN)
    grid = (pl.cdiv(n_rows, row_tile),)

    out_slab = pl.pallas_call(
        _poly_linear_kernel,
        out_shape=jax.ShapeDtypeStruct((n_rows, _LANE), jnp.float32),
        grid_spec=pltpu.PrefetchScalarGridSpec(
            num_scalar_prefetch=0,
            grid=grid,
            in_specs=[
                pl.BlockSpec(memory_space=pltpu.MemorySpace.SMEM),   # params
                pl.BlockSpec((row_tile, _LANE), lambda i: (i, 0)),   # x slab
            ],
            out_specs=pl.BlockSpec((row_tile, _LANE), lambda i: (i, 0)),
        ),
        compiler_params=pltpu.CompilerParams(
            dimension_semantics=("parallel",),
            # 4 MiB blocks double-buffered (in + out) = 16 MiB; 32 MiB scoped
            # limit keeps headroom and also lifts v5e's 16 MiB default.
            vmem_limit_bytes=32 * 1024 * 1024,
        ),
    )(params, x_slab)

    if aligned:
        return out_slab.reshape(n, 1)          # metadata-only reshape
    return out_slab.reshape(-1)[:n].reshape(n, 1)


if __name__ == "__main__":
    key = jax.random.PRNGKey(0)
    kw, kb = jax.random.split(key)

    # Deterministic parameter init matching nn.Linear(4, 1) shapes
    # (PyTorch-style uniform(-1/sqrt(fan_in), 1/sqrt(fan_in))).
    fan_in = 4
    bound = 1.0 / math.sqrt(fan_in)
    weight = jax.random.uniform(kw, (1, 4), jnp.float32, -bound, bound)
    bias = jax.random.uniform(kb, (1,), jnp.float32, -bound, bound)

    def reference(xs_):
        feats = jnp.stack([xs_, xs_ ** 2, xs_ ** 3, xs_ ** 4], axis=-1)
        return feats @ weight.T + bias

    # 1) Faithful to the original script: x = linspace(-2, 2, 50) (ragged path).
    xs_small = jnp.linspace(-2.0, 2.0, 50, dtype=jnp.float32)
    out_small = jax.block_until_ready(
        polynomi_regression_forward(xs_small, weight, bias))
    assert out_small.shape == (50, 1)
    assert jnp.allclose(out_small, reference(xs_small), atol=1e-5, rtol=1e-5)

    # 2) Lane/row-aligned copy-free path: 40 rows of 512 -> 2 grid steps with a
    #    partial boundary block (exercises OOB write masking + megacore split).
    xs_big = jnp.linspace(-2.0, 2.0, 40 * _LANE, dtype=jnp.float32)
    out_big = jax.block_until_ready(
        polynomi_regression_forward(xs_big, weight, bias))
    assert out_big.shape == (40 * _LANE, 1)
    assert jnp.allclose(out_big, reference(xs_big), atol=1e-5, rtol=1e-5)

    print("KERNEL_OK")
</pallas_src>

<mosaic_0001>
module attributes {stable_mosaic.version = 11 : i64} {
  func.func @_poly_linear_kernel(%arg0: i32, %arg1: memref<5xf32, #tpu.memory_space<smem>>, %arg2: memref<8x512xf32, #tpu.memory_space<vmem>>, %arg3: memref<8x512xf32, #tpu.memory_space<vmem>>) attributes {dimension_semantics = [#tpu.dimension_semantics<parallel>], iteration_bounds = array<i64: 1>, scalar_prefetch = 0 : i64, scratch_operands = 0 : i64, tpu.core_type = #tpu.core_type<tc>, window_params = [{transform_indices = @transform_0, window_bounds = array<i64: 5>}, {transform_indices = @transform_1, window_bounds = array<i64: 8, 512>}, {transform_indices = @transform_2, window_bounds = array<i64: 8, 512>}]} {
    %c0 = arith.constant 0 : index
    %0 = memref.load %arg1[%c0] : memref<5xf32, #tpu.memory_space<smem>>
    %c1 = arith.constant 1 : index
    %1 = memref.load %arg1[%c1] : memref<5xf32, #tpu.memory_space<smem>>
    %c2 = arith.constant 2 : index
    %2 = memref.load %arg1[%c2] : memref<5xf32, #tpu.memory_space<smem>>
    %c3 = arith.constant 3 : index
    %3 = memref.load %arg1[%c3] : memref<5xf32, #tpu.memory_space<smem>>
    %c4 = arith.constant 4 : index
    %4 = memref.load %arg1[%c4] : memref<5xf32, #tpu.memory_space<smem>>
    %c0_0 = arith.constant 0 : index
    %c0_1 = arith.constant 0 : index
    %5 = vector.load %arg2[%c0_0, %c0_1] : memref<8x512xf32, #tpu.memory_space<vmem>>, vector<8x512xf32>
    %6 = vector.broadcast %3 : f32 to vector<8x512xf32>
    %7 = arith.mulf %5, %6 : vector<8x512xf32>
    %8 = vector.broadcast %2 : f32 to vector<8x512xf32>
    %9 = arith.addf %8, %7 : vector<8x512xf32>
    %10 = arith.mulf %5, %9 : vector<8x512xf32>
    %11 = vector.broadcast %1 : f32 to vector<8x512xf32>
    %12 = arith.addf %11, %10 : vector<8x512xf32>
    %13 = arith.mulf %5, %12 : vector<8x512xf32>
    %14 = vector.broadcast %0 : f32 to vector<8x512xf32>
    %15 = arith.addf %14, %13 : vector<8x512xf32>
    %16 = arith.mulf %5, %15 : vector<8x512xf32>
    %17 = vector.broadcast %4 : f32 to vector<8x512xf32>
    %18 = arith.addf %17, %16 : vector<8x512xf32>
    %c0_2 = arith.constant 0 : index
    %c0_3 = arith.constant 0 : index
    %19 = vector.load %arg3[%c0_2, %c0_3] : memref<8x512xf32, #tpu.memory_space<vmem>>, vector<8x512xf32>
    tpu.vector_store %arg3[%c0_2, %c0_3], %18 {strides = array<i32>} : memref<8x512xf32, #tpu.memory_space<vmem>>, vector<8x512xf32>,
    return
  }
  func.func @transform_0(%arg0: i32) -> i32 {
    %c0_i32 = arith.constant 0 : i32
    %c0_i32_0 = arith.constant 0 : i32
    return %c0_i32 : i32
  }
  func.func @transform_1(%arg0: i32) -> (i32, i32) {
    %c0_i32 = arith.constant 0 : i32
    %c0_i32_0 = arith.constant 0 : i32
    return %arg0, %c0_i32 : i32, i32
  }
  func.func @transform_2(%arg0: i32) -> (i32, i32) {
    %c0_i32 = arith.constant 0 : i32
    %c0_i32_0 = arith.constant 0 : i32
    return %arg0, %c0_i32 : i32, i32
  }
}

</mosaic_0001>

<llo_original>
// kernel: tpu_custom_call.1
$region0: #{tpu_custom_call.1}
  #allocation0 [shape = 'u32[]', space=smem, size = 0x4, offset = 0x4, fixed_abs, tag = 'smem constant byte address 0x4 - core index']
  #allocation1 [shape = 'u32[144,128]{1,0:T(1,128)}', space=vmem, size = 0x12000, scoped, tag = 'internal scratch']
  %s0 = inlined_call_operand.hbm [shape: f32[5], index: 0, kind: input, shape index: {}]
  %s1 = inlined_call_operand.hbm [shape: f32[8,512], index: 1, kind: input, shape index: {}]
  %s2 = inlined_call_operand.hbm [shape: f32[8,512], index: 2, kind: output, shape index: {}]
  %s3 = sld [smem:[#allocation0]]
  $region26: #{tpu_custom_call.1} parent=0
    _
  %s5 = ssub.s32 1, %s3
  %s6 = scalar_select 0, %s5, %s3
  $region1: #{tpu_custom_call.1} parent=0
    #allocation2 [shape = 'u8[512]{0}', space=smem, size = 0x200, scoped, tag = 'input window, operand 0, single buffered']
    #allocation3 [shape = 's32[1]{0}', space=sflag, size = 0x4, scoped, tag = 'scoped memory for tpu_custom_call.1']
    #allocation4 [shape = 's32[1]{0}', space=sflag, size = 0x4, scoped, tag = 'scoped memory for tpu_custom_call.1']
    #allocation5 [shape = 's32[1]{0}', space=sflag, size = 0x4, scoped, tag = 'scoped memory for tpu_custom_call.1']
    #allocation6 [shape = 'u8[16384]{0}', space=vmem, size = 0x4000, scoped, tag = 'input window, operand 1, single buffered']
    #allocation7 [shape = 'u8[16384]{0}', space=vmem, size = 0x4000, scoped, tag = 'output window, operand 0, single buffered']
    %7 = vsyncpa [#allocation5], 0
    %8 = vsyncpa [#allocation3], 0
    %9 = vsyncpa [#allocation4], 0
    // Predicated region
    $region2: #{tpu_custom_call.1} parent=1 // pred_check
      _
    $region3: #{tpu_custom_call.1} parent=1 // pred_check_branch
      %11 = sbr.rel (0) target = $region5
    $region4: #{tpu_custom_call.1} parent=1 // pred_region
      %s13 = ssub.s32 16, 16
      %14 = vsyncadd [#allocation5], %s13
      %17 = dma.hbm_to_smem %s0, 16, [#allocation2], [#allocation5]
    $region5: #{tpu_custom_call.1} parent=1 // pred_fallthru
      _
    // Predicated region
    $region6: #{tpu_custom_call.1} parent=1 // pred_check
      _
    $region7: #{tpu_custom_call.1} parent=1 // pred_check_branch
      %19 = sbr.rel (0) target = $region9
    $region8: #{tpu_custom_call.1} parent=1 // pred_region
      %s21 = ssub.s32 512, 512
      %22 = vsyncadd [#allocation3], %s21
      %s24 = sshll.u32 [#allocation6], 4
      %s25 = int_to_ptr.vmem [resolvable:$true] %s24
      %27 = dma.hbm_to_vmem [thread:$0]  %s1, 512, %s25, [#allocation3]
    $region9: #{tpu_custom_call.1} parent=1 // pred_fallthru
      _
    // Predicated region
    $region10: #{tpu_custom_call.1} parent=1 // pred_check
      _
    $region11: #{tpu_custom_call.1} parent=1 // pred_check_branch
      %29 = sbr.rel (0) target = $region13
    $region12: #{tpu_custom_call.1} parent=1 // pred_region
      %30 = dma.done [#allocation5], 16
    $region13: #{tpu_custom_call.1} parent=1 // pred_fallthru
      _
    // Predicated region
    $region14: #{tpu_custom_call.1} parent=1 // pred_check
      _
    $region15: #{tpu_custom_call.1} parent=1 // pred_check_branch
      %32 = sbr.rel (0) target = $region17
    $region16: #{tpu_custom_call.1} parent=1 // pred_region
      %33 = dma.done [#allocation3], 512
    $region17: #{tpu_custom_call.1} parent=1 // pred_fallthru
      _
    %34 = sfence
    %s35 = sld [smem:[#allocation2]]
    %s36 = sld [smem:[#allocation2 + $0x1]]
    %s37 = sld [smem:[#allocation2 + $0x2]]
    %s38 = sld [smem:[#allocation2 + $0x3]]
    %s39 = sld [smem:[#allocation2 + $0x4]]
    %v40 = vld [vmem:[#allocation6] sm:$0xff]
    %v41 = vld [vmem:[#allocation6 + $0x8] sm:$0xff]
    %v42 = vld [vmem:[#allocation6 + $0x10] sm:$0xff]
    %v43 = vld [vmem:[#allocation6 + $0x18] sm:$0xff]
    %v44 = vstv %s38
    %v45 = vmul.f32 %v40, %v44
    %v46 = vmul.f32 %v41, %v44
    %v47 = vmul.f32 %v42, %v44
    %v48 = vmul.f32 %v43, %v44
    %v49 = vstv %s37
    %v50 = vadd.f32 %v49, %v45
    %v51 = vadd.f32 %v49, %v46
    %v52 = vadd.f32 %v49, %v47
    %v53 = vadd.f32 %v49, %v48
    %v54 = vmul.f32 %v40, %v50
    %v55 = vmul.f32 %v41, %v51
    %v56 = vmul.f32 %v42, %v52
    %v57 = vmul.f32 %v43, %v53
    %v58 = vstv %s36
    %v59 = vadd.f32 %v58, %v54
    %v60 = vadd.f32 %v58, %v55
    %v61 = vadd.f32 %v58, %v56
    %v62 = vadd.f32 %v58, %v57
    %v63 = vmul.f32 %v40, %v59
    %v64 = vmul.f32 %v41, %v60
    %v65 = vmul.f32 %v42, %v61
    %v66 = vmul.f32 %v43, %v62
    %v67 = vstv %s35
    %v68 = vadd.f32 %v67, %v63
    %v69 = vadd.f32 %v67, %v64
    %v70 = vadd.f32 %v67, %v65
    %v71 = vadd.f32 %v67, %v66
    %v72 = vmul.f32 %v40, %v68
    %v73 = vmul.f32 %v41, %v69
    %v74 = vmul.f32 %v42, %v70
    %v75 = vmul.f32 %v43, %v71
    %v76 = vstv %s39
    %v77 = vadd.f32 %v76, %v72
    %v78 = vadd.f32 %v76, %v73
    %v79 = vadd.f32 %v76, %v74
    %v80 = vadd.f32 %v76, %v75
    %81 = vst [vmem:[#allocation7] sm:$0xff] %v77
    %82 = vst [vmem:[#allocation7 + $0x8] sm:$0xff] %v78
    %83 = vst [vmem:[#allocation7 + $0x10] sm:$0xff] %v79
    %84 = vst [vmem:[#allocation7 + $0x18] sm:$0xff] %v80
    // Predicated region
    $region18: #{tpu_custom_call.1} parent=1 // pred_check
      _
    $region19: #{tpu_custom_call.1} parent=1 // pred_check_branch
      %86 = sbr.rel (0) target = $region21
    $region20: #{tpu_custom_call.1} parent=1 // pred_region
      %s88 = ssub.s32 512, 512
      %89 = vsyncadd [#allocation4], %s88
      %s91 = sshll.u32 [#allocation7], 4
      %s92 = int_to_ptr.vmem [resolvable:$true] %s91
      %94 = dma.vmem_to_hbm [thread:$0]  %s92, 512, %s2, [#allocation4]
    $region21: #{tpu_custom_call.1} parent=1 // pred_fallthru
      _
    // Predicated region
    $region22: #{tpu_custom_call.1} parent=1 // pred_check
      _
    $region23: #{tpu_custom_call.1} parent=1 // pred_check_branch
      %96 = sbr.rel (0) target = $region25
    $region24: #{tpu_custom_call.1} parent=1 // pred_region
      %97 = dma.done [#allocation4], 512
    $region25: #{tpu_custom_call.1} parent=1 // pred_fallthru
      _
    %98 = vsyncpa [#allocation3], 1
    %99 = vsyncpa [#allocation4], 1
    %100 = vsyncpa [#allocation5], 1

</llo_original>
